<compile_context>
chip_gen: v7x
topology: tpu7x:2x2x1
jax: 0.10.0
libtpu: 0.0.40
codegen_flags: <defaults>
</compile_context>

<pallas_src>
import functools

import jax
import jax.numpy as jnp
from jax.experimental import pallas as pl
from jax.experimental.pallas import tpu as pltpu

HID1 = 128
HID2 = 64


def _round_up(x, m):
    return ((x + m - 1) // m) * m


# ---------------------------------------------------------------------------
# Kernel: one batch tile of the full 3-layer MLP.
#   state_ref: (TB, in_pad)              bf16
#   slab_ref:  (in_pad + 2*lane + 8, lane) bf16   [W1 | W2 | W3 | bias rows]
#   out_ref:   (TB, lane)                f32      lane-dense (lane >= 128)
# ---------------------------------------------------------------------------
def qnetwork_kernel(state_ref, slab_ref, out_ref):
    in_pad = state_ref.shape[1]
    lane = out_ref.shape[1]

    x = state_ref[...]  # (TB, in_pad) bf16

    # Static, 8-aligned slices of the VMEM-resident weight slab.
    w1 = slab_ref[0:in_pad, :]                              # (in_pad, lane)
    w2 = slab_ref[in_pad:in_pad + lane, :]                  # (lane, lane)
    w3 = slab_ref[in_pad + lane:in_pad + 2 * lane, :]       # (lane, lane)
    bias = slab_ref[in_pad + 2 * lane:in_pad + 2 * lane + 8, :].astype(jnp.float32)
    b1 = bias[0:1, :]
    b2 = bias[1:2, :]
    b3 = bias[2:3, :]

    # dense1 + relu (bf16 MXU inputs, f32 accumulation / epilogue)
    h1 = jnp.dot(x, w1, preferred_element_type=jnp.float32) + b1
    h1 = jnp.maximum(h1, 0.0).astype(jnp.bfloat16)

    # dense2 + relu (padding columns of w2/b2 are zero -> padded lanes stay 0)
    h2 = jnp.dot(h1, w2, preferred_element_type=jnp.float32) + b2
    h2 = jnp.maximum(h2, 0.0).astype(jnp.bfloat16)

    # output_layer (padding rows/cols of w3 are zero)
    out = jnp.dot(h2, w3, preferred_element_type=jnp.float32) + b3
    out_ref[...] = out.astype(out_ref.dtype)


# ---------------------------------------------------------------------------
# Host-side packing of the six parameter arrays into one padded bf16 slab.
# Weights are stored (in_features, out_features), i.e. transposed vs PyTorch.
# ---------------------------------------------------------------------------
def pack_params(params, input_size, output_size):
    in_pad = _round_up(max(input_size, 1), 8)
    lane = _round_up(max(output_size, HID1), 128)

    def pad2(a, rows, cols):
        buf = jnp.zeros((rows, cols), jnp.float32)
        return buf.at[: a.shape[0], : a.shape[1]].set(a.astype(jnp.float32))

    w1 = pad2(params["w1"], in_pad, lane)   # (input_size, 128) -> (in_pad, lane)
    w2 = pad2(params["w2"], lane, lane)     # (128, 64)         -> (lane, lane)
    w3 = pad2(params["w3"], lane, lane)     # (64, out)         -> (lane, lane)

    bias = jnp.zeros((8, lane), jnp.float32)
    bias = bias.at[0, : params["b1"].size].set(params["b1"].reshape(-1))
    bias = bias.at[1, : params["b2"].size].set(params["b2"].reshape(-1))
    bias = bias.at[2, : params["b3"].size].set(params["b3"].reshape(-1))

    slab = jnp.concatenate([w1, w2, w3, bias], axis=0).astype(jnp.bfloat16)
    return slab  # (in_pad + 2*lane + 8, lane)


# ---------------------------------------------------------------------------
# Forward: streams batch tiles through the fused kernel.
# ---------------------------------------------------------------------------
@functools.partial(jax.jit, static_argnums=(2, 3))
def qnetwork_forward(state, slab, output_size, tb=512):
    B, input_size = state.shape
    in_pad = _round_up(input_size, 8)
    lane = _round_up(max(output_size, HID1), 128)
    assert slab.shape == (in_pad + 2 * lane + 8, lane)

    # Batch tile: multiple of 8 sublanes, modest so it also fits v7x's smaller VMEM
    # with double-buffered state/out tiles.
    tb = max(8, min(tb, _round_up(B, 8)))
    n_tiles = pl.cdiv(B, tb)
    b_pad = n_tiles * tb

    # Pad batch to a tile multiple and features to in_pad; cast the streamed
    # activations to bf16 (halves HBM->VMEM bytes).
    xs = jnp.zeros((b_pad, in_pad), jnp.bfloat16)
    xs = xs.at[:B, :input_size].set(state.astype(jnp.bfloat16))

    out = pl.pallas_call(
        qnetwork_kernel,
        out_shape=jax.ShapeDtypeStruct((b_pad, lane), jnp.float32),
        grid=(n_tiles,),
        in_specs=[
            pl.BlockSpec((tb, in_pad), lambda i: (i, 0)),     # streamed batch tile
            pl.BlockSpec(slab.shape, lambda i: (0, 0)),       # weights: VMEM-resident
        ],
        out_specs=pl.BlockSpec((tb, lane), lambda i: (i, 0)),  # lane-dense stores
        compiler_params=pltpu.CompilerParams(
            dimension_semantics=("parallel",),
            vmem_limit_bytes=32 * 1024 * 1024,
        ),
    )(xs, slab)

    return out[:B, :output_size]


# ---------------------------------------------------------------------------
# Parameter init (shapes match the PyTorch module) and a pure-JAX reference
# that mirrors the kernel's bf16 storage / f32 accumulation.
# ---------------------------------------------------------------------------
def init_params(key, input_size, output_size):
    ks = jax.random.split(key, 6)

    def uniform(k, shape, fan_in):
        bound = 1.0 / jnp.sqrt(fan_in)
        return jax.random.uniform(k, shape, jnp.float32, -bound, bound)

    return {
        "w1": uniform(ks[0], (input_size, HID1), input_size),
        "b1": uniform(ks[1], (1, HID1), input_size),
        "w2": uniform(ks[2], (HID1, HID2), HID1),
        "b2": uniform(ks[3], (1, HID2), HID1),
        "w3": uniform(ks[4], (HID2, output_size), HID2),
        "b3": uniform(ks[5], (1, output_size), HID2),
    }


def reference_forward(state, p):
    bf = lambda a: a.astype(jnp.bfloat16).astype(jnp.float32)
    x = bf(state)
    h1 = jnp.maximum(x @ bf(p["w1"]) + p["b1"], 0.0)
    h2 = jnp.maximum(bf(h1) @ bf(p["w2"]) + p["b2"], 0.0)
    return bf(h2) @ bf(p["w3"]) + p["b3"]


if __name__ == "__main__":
    key = jax.random.PRNGKey(0)
    k_state, k_params = jax.random.split(key)

    # Small demo shapes. B is deliberately NOT a multiple of the batch tile to
    # exercise padding, and tb < B exercises the multi-step (streamed) grid.
    B, input_size, output_size = 24, 32, 8
    state = jax.random.normal(k_state, (B, input_size), jnp.float32)
    params = init_params(k_params, input_size, output_size)
    slab = pack_params(params, input_size, output_size)

    out = qnetwork_forward(state, slab, output_size, 16)
    out = jax.block_until_ready(out)

    ref = reference_forward(state, params)
    assert out.shape == (B, output_size)
    assert jnp.allclose(out, ref, atol=2e-2, rtol=2e-2), float(jnp.max(jnp.abs(out - ref)))

    print("KERNEL_OK")
</pallas_src>

<mosaic_0001>
module attributes {stable_mosaic.version = 11 : i64} {
  func.func @qnetwork_kernel(%arg0: i32, %arg1: memref<16x32xbf16, #tpu.memory_space<vmem>>, %arg2: memref<296x128xbf16, #tpu.memory_space<vmem>>, %arg3: memref<16x128xf32, #tpu.memory_space<vmem>>) attributes {dimension_semantics = [#tpu.dimension_semantics<parallel>], iteration_bounds = array<i64: 2>, scalar_prefetch = 0 : i64, scratch_operands = 0 : i64, tpu.core_type = #tpu.core_type<tc>, window_params = [{transform_indices = @transform_0, window_bounds = array<i64: 16, 32>}, {pipeline_mode = #tpu.pipeline_mode<synchronous>, transform_indices = @transform_1, window_bounds = array<i64: 296, 128>}, {transform_indices = @transform_2, window_bounds = array<i64: 16, 128>}]} {
    %c0 = arith.constant 0 : index
    %c0_0 = arith.constant 0 : index
    %0 = vector.load %arg1[%c0, %c0_0] : memref<16x32xbf16, #tpu.memory_space<vmem>>, vector<16x32xbf16>
    %c0_1 = arith.constant 0 : index
    %c0_2 = arith.constant 0 : index
    %1 = vector.load %arg2[%c0_1, %c0_2] : memref<296x128xbf16, #tpu.memory_space<vmem>>, vector<32x128xbf16>
    %c32 = arith.constant 32 : index
    %c0_3 = arith.constant 0 : index
    %2 = vector.load %arg2[%c32, %c0_3] : memref<296x128xbf16, #tpu.memory_space<vmem>>, vector<128x128xbf16>
    %c160 = arith.constant 160 : index
    %c0_4 = arith.constant 0 : index
    %3 = vector.load %arg2[%c160, %c0_4] : memref<296x128xbf16, #tpu.memory_space<vmem>>, vector<128x128xbf16>
    %c288 = arith.constant 288 : index
    %c0_5 = arith.constant 0 : index
    %4 = vector.load %arg2[%c288, %c0_5] : memref<296x128xbf16, #tpu.memory_space<vmem>>, vector<8x128xbf16>
    %5 = arith.extf %4 : vector<8x128xbf16> to vector<8x128xf32>
    %6 = vector.extract_strided_slice %5 {offsets = [0, 0], sizes = [1, 128], strides = [1, 1]} : vector<8x128xf32> to vector<1x128xf32>
    %7 = vector.extract_strided_slice %5 {offsets = [1, 0], sizes = [1, 128], strides = [1, 1]} : vector<8x128xf32> to vector<1x128xf32>
    %8 = vector.extract_strided_slice %5 {offsets = [2, 0], sizes = [1, 128], strides = [1, 1]} : vector<8x128xf32> to vector<1x128xf32>
    %cst = arith.constant dense<0.000000e+00> : vector<16x128xf32>
    %9 = tpu.matmul %0, %1, %cst {dimension_numbers = #tpu.dot_dimension_numbers<[1], [0], [0], [1], [0, 0, 1, 1], [], []>} : vector<16x32xbf16>, vector<32x128xbf16>, vector<16x128xf32> -> vector<16x128xf32>
    %10 = vector.broadcast %6 : vector<1x128xf32> to vector<16x128xf32>
    %11 = arith.addf %9, %10 : vector<16x128xf32>
    %cst_6 = arith.constant 0.000000e+00 : f32
    %12 = vector.broadcast %cst_6 : f32 to vector<16x128xf32>
    %13 = arith.maximumf %11, %12 : vector<16x128xf32>
    %14 = arith.truncf %13 : vector<16x128xf32> to vector<16x128xbf16>
    %cst_7 = arith.constant dense<0.000000e+00> : vector<16x128xf32>
    %15 = tpu.matmul %14, %2, %cst_7 {dimension_numbers = #tpu.dot_dimension_numbers<[1], [0], [0], [1], [0, 0, 1, 1], [], []>} : vector<16x128xbf16>, vector<128x128xbf16>, vector<16x128xf32> -> vector<16x128xf32>
    %16 = vector.broadcast %7 : vector<1x128xf32> to vector<16x128xf32>
    %17 = arith.addf %15, %16 : vector<16x128xf32>
    %cst_8 = arith.constant 0.000000e+00 : f32
    %18 = vector.broadcast %cst_8 : f32 to vector<16x128xf32>
    %19 = arith.maximumf %17, %18 : vector<16x128xf32>
    %20 = arith.truncf %19 : vector<16x128xf32> to vector<16x128xbf16>
    %cst_9 = arith.constant dense<0.000000e+00> : vector<16x128xf32>
    %21 = tpu.matmul %20, %3, %cst_9 {dimension_numbers = #tpu.dot_dimension_numbers<[1], [0], [0], [1], [0, 0, 1, 1], [], []>} : vector<16x128xbf16>, vector<128x128xbf16>, vector<16x128xf32> -> vector<16x128xf32>
    %22 = vector.broadcast %8 : vector<1x128xf32> to vector<16x128xf32>
    %23 = arith.addf %21, %22 : vector<16x128xf32>
    %c0_10 = arith.constant 0 : index
    %c0_11 = arith.constant 0 : index
    %24 = vector.load %arg3[%c0_10, %c0_11] : memref<16x128xf32, #tpu.memory_space<vmem>>, vector<16x128xf32>
    tpu.vector_store %arg3[%c0_10, %c0_11], %23 {strides = array<i32>} : memref<16x128xf32, #tpu.memory_space<vmem>>, vector<16x128xf32>,
    return
  }
  func.func @transform_0(%arg0: i32) -> (i32, i32) {
    %c0_i32 = arith.constant 0 : i32
    %c0_i32_0 = arith.constant 0 : i32
    return %arg0, %c0_i32 : i32, i32
  }
  func.func @transform_1(%arg0: i32) -> (i32, i32) {
    %c0_i32 = arith.constant 0 : i32
    %c0_i32_0 = arith.constant 0 : i32
    %c0_i32_1 = arith.constant 0 : i32
    return %c0_i32, %c0_i32_0 : i32, i32
  }
  func.func @transform_2(%arg0: i32) -> (i32, i32) {
    %c0_i32 = arith.constant 0 : i32
    %c0_i32_0 = arith.constant 0 : i32
    return %arg0, %c0_i32 : i32, i32
  }
}

</mosaic_0001>

<llo_original>
// kernel: qnetwork_forward.1
$region0: #{qnetwork_forward.1}
  #allocation0 [shape = 'u32[]', space=smem, size = 0x4, offset = 0x4, fixed_abs, tag = 'smem constant byte address 0x4 - core index']
  #allocation1 [shape = 'u32[144,128]{1,0:T(1,128)}', space=vmem, size = 0x12000, scoped, tag = 'internal scratch']
  %s0 = inlined_call_operand.vmem [shape: bf16[32,32], index: 0, kind: input, shape index: {}]
  %s1 = inlined_call_operand.hbm [shape: bf16[296,128], index: 1, kind: input, shape index: {}]
  %s2 = inlined_call_operand.vmem [shape: f32[32,128], index: 2, kind: output, shape index: {}]
  %s3 = sld [smem:[#allocation0]]
  $region45: #{qnetwork_forward.1} parent=0
    _
  %s5 = ssub.s32 1, %s3
  %s6 = scalar_select 0, %s5, %s3
  $region1: #{qnetwork_forward.1} parent=0
    #allocation2 [shape = 'u8[75776]{0}', space=vmem, size = 0x12800, scoped, tag = 'input window, operand 1, single buffered']
    #allocation3 [shape = 's32[2]{0}', space=sflag, size = 0x8, scoped, tag = 'scoped memory for qnetwork_forward.1']
    %7 = vsyncpa [#allocation3], 0
    loop: start=0, step=1, limit=4
    $region2: #{qnetwork_forward.1} parent=1 // loop_pre_header
      _
    $region3: #{qnetwork_forward.1} parent=1 // loop_header
      %s9 = sphi 0, %s13
      %p10 = scmp.ge.s32.totalorder %s9, 4
      %s19 = sphi 0, %s21
      %s22 = sphi 0, %s19
      %s23 = sphi 0, %s22
      %s39 = sphi 0, %s23
      %s43 = sphi 0, %s43
      %s45 = sphi 0, %s43
      %s46 = sphi 0, %s45
      %s60 = sphi 0, %s46
      %s66 = sphi 0, %s68
      %s69 = sphi 0, %s66
      %s70 = sphi 0, %s69
      %s86 = sphi 0, %s70
    $region4: #{qnetwork_forward.1} parent=1 // loop_header_branch
      %12 = sbr.rel (%p10) target = $region8
    $region5: #{qnetwork_forward.1} parent=1 // loop_body
      %s14 = ssub.s32 %s9, 1
      %s15 = ssub.s32 %s9, 2
      %s16 = sadd.s32 %s9, 1
      %s17 = ssub.s32 %s9, %s16
      %p18 = scmp.eq.s32.totalorder %s17, 0
      %s20 = sadd.s32 %s19, 1
      %s21 = scalar_select %p18, %s19, %s20
      %p24 = pneg %p18
      %p25 = scmp.eq.s32.totalorder %s9, 1
      %p26 = por %p24, %p25
      %p27 = scmp.ne.s32.totalorder %s19, %s22
      %p28 = scmp.eq.s32.totalorder %s9, 0
      %p29 = por %p27, %p28
      %p30 = scmp.ne.s32.totalorder %s19, %s22
      %p31 = scmp.eq.s32.totalorder %s14, 1
      %p32 = por %p30, %p31
      %p33 = scmp.ne.s32.totalorder %s22, %s23
      %p34 = scmp.eq.s32.totalorder %s14, 0
      %p35 = por %p33, %p34
      %p36 = scmp.ne.s32.totalorder %s22, %s23
      %p37 = scmp.eq.s32.totalorder %s15, 1
      %p38 = por %p36, %p37
      %p40 = scmp.ne.s32.totalorder %s23, %s39
      %p41 = scmp.eq.s32.totalorder %s15, 0
      %p42 = por %p40, %p41
      %s44 = sadd.s32 %s43, 1
      %p47 = scmp.eq.s32.totalorder %s9, 1
      %p48 = scmp.ne.s32.totalorder %s43, %s45
      %p49 = scmp.eq.s32.totalorder %s9, 0
      %p50 = por %p48, %p49
      %p51 = scmp.ne.s32.totalorder %s43, %s45
      %p52 = scmp.eq.s32.totalorder %s14, 1
      %p53 = por %p51, %p52
      %p54 = scmp.ne.s32.totalorder %s45, %s46
      %p55 = scmp.eq.s32.totalorder %s14, 0
      %p56 = por %p54, %p55
      %p57 = scmp.ne.s32.totalorder %s45, %s46
      %p58 = scmp.eq.s32.totalorder %s15, 1
      %p59 = por %p57, %p58
      %p61 = scmp.ne.s32.totalorder %s46, %s60
      %p62 = scmp.eq.s32.totalorder %s15, 0
      %p63 = por %p61, %p62
      %s64 = ssub.s32 %s9, %s16
      %p65 = scmp.eq.s32.totalorder %s64, 0
      %s67 = sadd.s32 %s66, 1
      %s68 = scalar_select %p65, %s66, %s67
      %p71 = pneg %p65
      %p72 = scmp.eq.s32.totalorder %s9, 1
      %p73 = por %p71, %p72
      %p74 = scmp.ne.s32.totalorder %s66, %s69
      %p75 = scmp.eq.s32.totalorder %s9, 0
      %p76 = por %p74, %p75
      %p77 = scmp.ne.s32.totalorder %s66, %s69
      %p78 = scmp.eq.s32.totalorder %s14, 1
      %p79 = por %p77, %p78
      %p80 = scmp.ne.s32.totalorder %s69, %s70
      %p81 = scmp.eq.s32.totalorder %s14, 0
      %p82 = por %p80, %p81
      %p83 = scmp.ne.s32.totalorder %s69, %s70
      %p84 = scmp.eq.s32.totalorder %s15, 1
      %p85 = por %p83, %p84
      %p87 = scmp.ne.s32.totalorder %s70, %s86
      %p88 = scmp.eq.s32.totalorder %s15, 0
      %p89 = por %p87, %p88
      %p90 = scmp.le.s32.totalorder 1, %s9
      %p91 = scmp.lt.s32.totalorder %s9, 3
      %p92 = pnand %p90, %p91
      %p93 = pneg %p92
      // Predicated region
      $region9: #{qnetwork_forward.1} parent=5 // pred_check
        _
      $region10: #{qnetwork_forward.1} parent=5 // pred_check_branch
        %95 = sbr.rel (%p92) target = $region12
      $region11: #{qnetwork_forward.1} parent=5 // pred_region
        %s96 = ssub.s32 %s9, 1
        // Predicated region
        $region13: #{qnetwork_forward.1} parent=11 // pred_check
          %p97 = pneg %p56
        $region14: #{qnetwork_forward.1} parent=11 // pred_check_branch
          %99 = sbr.rel (%p97) target = $region16
        $region15: #{qnetwork_forward.1} parent=11 // pred_region
          %s101 = ssub.s32 2368, 2368
          %102 = vsyncadd [#allocation3], %s101
          %s103 = sshll.u32 [#allocation2], 4
          %s104 = int_to_ptr.vmem [resolvable:$true] %s103
          %109 = dma.hbm_to_vmem [thread:$0]  %s1, 2368, %s104, [#allocation3], 64, 64, 4
        $region16: #{qnetwork_forward.1} parent=11 // pred_fallthru
          _
      $region12: #{qnetwork_forward.1} parent=5 // pred_fallthru
        _
      %p110 = scmp.lt.s32.totalorder %s9, 2
      // Predicated region
      $region17: #{qnetwork_forward.1} parent=5 // pred_check
        %p111 = pneg %p110
      $region18: #{qnetwork_forward.1} parent=5 // pred_check_branch
        %113 = sbr.rel (%p111) target = $region20
      $region19: #{qnetwork_forward.1} parent=5 // pred_region
        // Predicated region
        $region21: #{qnetwork_forward.1} parent=19 // pred_check
          %p114 = pneg %p29
        $region22: #{qnetwork_forward.1} parent=19 // pred_check_branch
          %116 = sbr.rel (%p114) target = $region24
        $region23: #{qnetwork_forward.1} parent=19 // pred_region
          %s117 = smul.u32 2, %s9
          %p118 = scmp.lt.s32.totalorder %s117, 3
          %s119 = scalar_select %p118, %s117, 3
          %s120 = smul.addr %s119, 4
          %s121 = scalar_lea.vmem %s0, %s120
          %s122 = smul.u32 2, %s9
        $region24: #{qnetwork_forward.1} parent=19 // pred_fallthru
          _
      $region20: #{qnetwork_forward.1} parent=5 // pred_fallthru
        _
      %p123 = scmp.le.s32.totalorder 1, %s9
      %p124 = scmp.lt.s32.totalorder %s9, 3
      %p125 = pnand %p123, %p124
      %p126 = pneg %p125
      // Predicated region
      $region25: #{qnetwork_forward.1} parent=5 // pred_check
        _
      $region26: #{qnetwork_forward.1} parent=5 // pred_check_branch
        %128 = sbr.rel (%p125) target = $region28
      $region27: #{qnetwork_forward.1} parent=5 // pred_region
        %s129 = ssub.s32 %s9, 1
        // Predicated region
        $region29: #{qnetwork_forward.1} parent=27 // pred_check
          %p130 = pneg %p56
        $region30: #{qnetwork_forward.1} parent=27 // pred_check_branch
          %132 = sbr.rel (%p130) target = $region32
        $region31: #{qnetwork_forward.1} parent=27 // pred_region
          %133 = dma.done [#allocation3], 2368
        $region32: #{qnetwork_forward.1} parent=27 // pred_fallthru
          _
        %s134 = smul.u32 2, %s14
        %p135 = scmp.lt.s32.totalorder %s134, 3
        %s136 = scalar_select %p135, %s134, 3
        %s137 = smul.addr %s136, 4
        %s138 = scalar_lea.vmem %s0, %s137
        %p139 = pneg %p35
        %p140 = pneg %p32
        %p141 = pneg %p56
        %p142 = pneg %p53
        %p143 = pneg %p82
        %p144 = pneg %p79
        %s145 = smul.u32 2, %s14
        %p146 = scmp.lt.s32.totalorder %s145, 3
        %s147 = scalar_select %p146, %s145, 3
        %s148 = smul.addr %s147, 8
        %s149 = scalar_lea.vmem %s2, %s148
        %s150 = smul.u32 2, %s14
        %p151 = scmp.lt.s32.totalorder %s150, 3
        %s152 = scalar_select %p151, %s150, 3
        %s153 = smul.addr %s152, 4
        %s154 = scalar_lea.vmem %s0, %s153
        %s155 = smul.u32 2, %s14
        %s156 = smul.u32 2, %s14
        %p157 = scmp.lt.s32.totalorder %s156, 3
        %s158 = scalar_select %p157, %s156, 3
        %s159 = smul.addr %s158, 8
        %s160 = scalar_lea.vmem %s2, %s159
        %s161 = smul.u32 2, %s14
        %v163 = vld [vmem:[%s154] sm:$0xf]
        %v164 = vld [vmem:[%s154 + $0x4] sm:$0xf]
        %v165 = vld [vmem:[#allocation2] sm:$0xf]
        %v166 = vld [vmem:[#allocation2 + $0x4] sm:$0xf]
        %v167 = vld [vmem:[#allocation2 + $0x8] sm:$0xf]
        %v168 = vld [vmem:[#allocation2 + $0xc] sm:$0xf]
        %v169 = vld [vmem:[#allocation2 + $0x10] sm:$0xf]
        %v170 = vld [vmem:[#allocation2 + $0x14] sm:$0xf]
        %v171 = vld [vmem:[#allocation2 + $0x18] sm:$0xf]
        %v172 = vld [vmem:[#allocation2 + $0x1c] sm:$0xf]
        %v173 = vld [vmem:[#allocation2 + $0x20] sm:$0xf]
        %v174 = vld [vmem:[#allocation2 + $0x24] sm:$0xf]
        %v175 = vld [vmem:[#allocation2 + $0x28] sm:$0xf]
        %v176 = vld [vmem:[#allocation2 + $0x2c] sm:$0xf]
        %v177 = vld [vmem:[#allocation2 + $0x30] sm:$0xf]
        %v178 = vld [vmem:[#allocation2 + $0x34] sm:$0xf]
        %v179 = vld [vmem:[#allocation2 + $0x38] sm:$0xf]
        %v180 = vld [vmem:[#allocation2 + $0x3c] sm:$0xf]
        %v181 = vld [vmem:[#allocation2 + $0x40] sm:$0xf]
        %v182 = vld [vmem:[#allocation2 + $0x44] sm:$0xf]
        %v183 = vld [vmem:[#allocation2 + $0x48] sm:$0xf]
        %v184 = vld [vmem:[#allocation2 + $0x4c] sm:$0xf]
        %v185 = vld [vmem:[#allocation2 + $0x50] sm:$0xf]
        %v186 = vld [vmem:[#allocation2 + $0x54] sm:$0xf]
        %v187 = vld [vmem:[#allocation2 + $0x58] sm:$0xf]
        %v188 = vld [vmem:[#allocation2 + $0x5c] sm:$0xf]
        %v189 = vld [vmem:[#allocation2 + $0x60] sm:$0xf]
        %v190 = vld [vmem:[#allocation2 + $0x64] sm:$0xf]
        %v191 = vld [vmem:[#allocation2 + $0x68] sm:$0xf]
        %v192 = vld [vmem:[#allocation2 + $0x6c] sm:$0xf]
        %v193 = vld [vmem:[#allocation2 + $0x70] sm:$0xf]
        %v194 = vld [vmem:[#allocation2 + $0x74] sm:$0xf]
        %v195 = vld [vmem:[#allocation2 + $0x78] sm:$0xf]
        %v196 = vld [vmem:[#allocation2 + $0x7c] sm:$0xf]
        %v197 = vld [vmem:[#allocation2 + $0x80] sm:$0xf]
        %v198 = vld [vmem:[#allocation2 + $0x84] sm:$0xf]
        %v199 = vld [vmem:[#allocation2 + $0x88] sm:$0xf]
        %v200 = vld [vmem:[#allocation2 + $0x8c] sm:$0xf]
        %v201 = vld [vmem:[#allocation2 + $0x90] sm:$0xf]
        %v202 = vunpack.c.l.bf16 %v201
        %v203 = vlaneseq
        %v204 = vshrl.u32 %v203, 7
        %v205 = vsub.s32 0, %v204
        %v206 = vrot.slane %v202, %v205
        %v209 = vunpack.c.l.b16 %v163
        %v210 = vunpack.c.l.b16 %v164
        %v211 = vpack.c.b16 %v210, %v209
        %v216 = vunpack.c.l.b16 %v165
        %v217 = vunpack.c.l.b16 %v166
        %v218 = vunpack.c.l.b16 %v167
        %v219 = vunpack.c.l.b16 %v168
        %v220 = vpack.c.b16 %v217, %v216
        %v221 = vpack.c.b16 %v219, %v218
        %vm224 = vcmask 261120
        %v226 = vsel %vm224, %v211, 0
        %228 = vmatprep.subr.bf16.mxu0 0
        %229 = vmatpush1.bf16.msra.mxu0 %v220
        %230 = vmatprep.subr.bf16.mxu0 0
        %231 = vmatpush1.bf16.msra.mxu0 %v221
        %232 = vmatprep.subr.bf16.mxu0 0
        %233 = vmatpush1.bf16.msra.mxu0 0
        %234 = vmatprep.subr.bf16.mxu0 0
        %235 = vmatpush1.bf16.msra.mxu0 0
        %236 = vmatprep.subr.bf16.mxu0 0
        %237 = vmatpush1.bf16.msra.mxu0 0
        %238 = vmatprep.subr.bf16.mxu0 0
        %239 = vmatpush1.bf16.msra.mxu0 0
        %240 = vmatprep.subr.bf16.mxu0 0
        %241 = vmatpush1.bf16.msra.mxu0 0
        %242 = vmatprep.subr.bf16.mxu0 0
        %243 = vmatpush1.bf16.msra.mxu0 0
        %244 = vmatprep.subr.bf16.mxu0 0
        %245 = vmatpush1.bf16.msra.mxu0 0
        %246 = vmatprep.subr.bf16.mxu0 0
        %247 = vmatpush1.bf16.msra.mxu0 0
        %248 = vmatprep.subr.bf16.mxu0 0
        %249 = vmatpush1.bf16.msra.mxu0 0
        %250 = vmatprep.subr.bf16.mxu0 0
        %251 = vmatpush1.bf16.msra.mxu0 0
        %252 = vmatprep.subr.bf16.mxu0 0
        %253 = vmatpush1.bf16.msra.mxu0 0
        %254 = vmatprep.subr.bf16.mxu0 0
        %255 = vmatpush1.bf16.msra.mxu0 0
        %256 = vmatprep.subr.bf16.mxu0 0
        %257 = vmatpush1.bf16.msra.mxu0 0
        %258 = vmatprep.subr.bf16.mxu0 0
        %259 = vmatpush1.bf16.msra.mxu0 0
        %260 = vmatprep.mubr.bf16.mxu0 0
        %261 = vmatmul.mubr.bf16.gmra.mrb[0].mxu0 %v226
        %v262 = vpop.f32.mrb[0].mxu0
        %v263 = vadd.f32 %v206, %v262
        %v264 = vpop.f32.mrb[0].mxu0
        %v265 = vpop.f32.mrb[0].mxu0
        %v266 = vadd.f32 %v206, %v265
        %v267 = vpop.f32.mrb[0].mxu0
        %268 = vdwg.mxu0
        %v269 = vmax.f32 %v263, 0.0
        %v270 = vmax.f32 %v266, 0.0
        %v271 = vpack.c.bf16 %v270, %v269
        %v272 = vlaneseq
        %v273 = vshrl.u32 %v272, 7
        %v274 = vsub.s32 1, %v273
        %v275 = vrot.slane %v202, %v274
        %v292 = vunpack.c.l.b16 %v169
        %v293 = vunpack.c.l.b16 %v170
        %v294 = vunpack.c.l.b16 %v171
        %v295 = vunpack.c.l.b16 %v172
        %v296 = vunpack.c.l.b16 %v173
        %v297 = vunpack.c.l.b16 %v174
        %v298 = vunpack.c.l.b16 %v175
        %v299 = vunpack.c.l.b16 %v176
        %v300 = vunpack.c.l.b16 %v177
        %v301 = vunpack.c.l.b16 %v178
        %v302 = vunpack.c.l.b16 %v179
        %v303 = vunpack.c.l.b16 %v180
        %v304 = vunpack.c.l.b16 %v181
        %v305 = vunpack.c.l.b16 %v182
        %v306 = vunpack.c.l.b16 %v183
        %v307 = vunpack.c.l.b16 %v184
        %v308 = vpack.c.b16 %v293, %v292
        %v309 = vpack.c.b16 %v295, %v294
        %v310 = vpack.c.b16 %v297, %v296
        %v311 = vpack.c.b16 %v299, %v298
        %v312 = vpack.c.b16 %v301, %v300
        %v313 = vpack.c.b16 %v303, %v302
        %v314 = vpack.c.b16 %v305, %v304
        %v315 = vpack.c.b16 %v307, %v306
        %324 = vmatprep.subr.bf16.mxu0 0
        %325 = vmatpush1.bf16.msra.mxu0 %v308
        %326 = vmatprep.subr.bf16.mxu0 0
        %327 = vmatpush1.bf16.msra.mxu0 %v309
        %328 = vmatprep.subr.bf16.mxu0 0
        %329 = vmatpush1.bf16.msra.mxu0 %v310
        %330 = vmatprep.subr.bf16.mxu0 0
        %331 = vmatpush1.bf16.msra.mxu0 %v311
        %332 = vmatprep.subr.bf16.mxu0 0
        %333 = vmatpush1.bf16.msra.mxu0 %v312
        %334 = vmatprep.subr.bf16.mxu0 0
        %335 = vmatpush1.bf16.msra.mxu0 %v313
        %336 = vmatprep.subr.bf16.mxu0 0
        %337 = vmatpush1.bf16.msra.mxu0 %v314
        %338 = vmatprep.subr.bf16.mxu0 0
        %339 = vmatpush1.bf16.msra.mxu0 %v315
        %340 = vmatprep.subr.bf16.mxu0 0
        %341 = vmatpush1.bf16.msra.mxu0 0
        %342 = vmatprep.subr.bf16.mxu0 0
        %343 = vmatpush1.bf16.msra.mxu0 0
        %344 = vmatprep.subr.bf16.mxu0 0
        %345 = vmatpush1.bf16.msra.mxu0 0
        %346 = vmatprep.subr.bf16.mxu0 0
        %347 = vmatpush1.bf16.msra.mxu0 0
        %348 = vmatprep.subr.bf16.mxu0 0
        %349 = vmatpush1.bf16.msra.mxu0 0
        %350 = vmatprep.subr.bf16.mxu0 0
        %351 = vmatpush1.bf16.msra.mxu0 0
        %352 = vmatprep.subr.bf16.mxu0 0
        %353 = vmatpush1.bf16.msra.mxu0 0
        %354 = vmatprep.subr.bf16.mxu0 0
        %355 = vmatpush1.bf16.msra.mxu0 0
        %356 = vmatprep.mubr.bf16.mxu0 0
        %357 = vmatmul.mubr.bf16.gmra.mrb[0].mxu0 %v271
        %v358 = vpop.f32.mrb[0].mxu0
        %v359 = vadd.f32 %v275, %v358
        %v360 = vpop.f32.mrb[0].mxu0
        %v361 = vpop.f32.mrb[0].mxu0
        %v362 = vadd.f32 %v275, %v361
        %v363 = vpop.f32.mrb[0].mxu0
        %364 = vdwg.mxu0
        %v365 = vmax.f32 %v359, 0.0
        %v366 = vmax.f32 %v362, 0.0
        %v367 = vpack.c.bf16 %v366, %v365
        %v368 = vlaneseq
        %v369 = vshrl.u32 %v368, 7
        %v370 = vsub.s32 2, %v369
        %v371 = vrot.slane %v202, %v370
        %v388 = vunpack.c.l.b16 %v185
        %v389 = vunpack.c.l.b16 %v186
        %v390 = vunpack.c.l.b16 %v187
        %v391 = vunpack.c.l.b16 %v188
        %v392 = vunpack.c.l.b16 %v189
        %v393 = vunpack.c.l.b16 %v190
        %v394 = vunpack.c.l.b16 %v191
        %v395 = vunpack.c.l.b16 %v192
        %v396 = vunpack.c.l.b16 %v193
        %v397 = vunpack.c.l.b16 %v194
        %v398 = vunpack.c.l.b16 %v195
        %v399 = vunpack.c.l.b16 %v196
        %v400 = vunpack.c.l.b16 %v197
        %v401 = vunpack.c.l.b16 %v198
        %v402 = vunpack.c.l.b16 %v199
        %v403 = vunpack.c.l.b16 %v200
        %v404 = vpack.c.b16 %v389, %v388
        %v405 = vpack.c.b16 %v391, %v390
        %v406 = vpack.c.b16 %v393, %v392
        %v407 = vpack.c.b16 %v395, %v394
        %v408 = vpack.c.b16 %v397, %v396
        %v409 = vpack.c.b16 %v399, %v398
        %v410 = vpack.c.b16 %v401, %v400
        %v411 = vpack.c.b16 %v403, %v402
        %420 = vmatprep.subr.bf16.mxu0 0
        %421 = vmatpush1.bf16.msra.mxu0 %v404
        %422 = vmatprep.subr.bf16.mxu0 0
        %423 = vmatpush1.bf16.msra.mxu0 %v405
        %424 = vmatprep.subr.bf16.mxu0 0
        %425 = vmatpush1.bf16.msra.mxu0 %v406
        %426 = vmatprep.subr.bf16.mxu0 0
        %427 = vmatpush1.bf16.msra.mxu0 %v407
        %428 = vmatprep.subr.bf16.mxu0 0
        %429 = vmatpush1.bf16.msra.mxu0 %v408
        %430 = vmatprep.subr.bf16.mxu0 0
        %431 = vmatpush1.bf16.msra.mxu0 %v409
        %432 = vmatprep.subr.bf16.mxu0 0
        %433 = vmatpush1.bf16.msra.mxu0 %v410
        %434 = vmatprep.subr.bf16.mxu0 0
        %435 = vmatpush1.bf16.msra.mxu0 %v411
        %436 = vmatprep.subr.bf16.mxu0 0
        %437 = vmatpush1.bf16.msra.mxu0 0
        %438 = vmatprep.subr.bf16.mxu0 0
        %439 = vmatpush1.bf16.msra.mxu0 0
        %440 = vmatprep.subr.bf16.mxu0 0
        %441 = vmatpush1.bf16.msra.mxu0 0
        %442 = vmatprep.subr.bf16.mxu0 0
        %443 = vmatpush1.bf16.msra.mxu0 0
        %444 = vmatprep.subr.bf16.mxu0 0
        %445 = vmatpush1.bf16.msra.mxu0 0
        %446 = vmatprep.subr.bf16.mxu0 0
        %447 = vmatpush1.bf16.msra.mxu0 0
        %448 = vmatprep.subr.bf16.mxu0 0
        %449 = vmatpush1.bf16.msra.mxu0 0
        %450 = vmatprep.subr.bf16.mxu0 0
        %451 = vmatpush1.bf16.msra.mxu0 0
        %452 = vmatprep.mubr.bf16.mxu0 0
        %453 = vmatmul.mubr.bf16.gmra.mrb[0].mxu0 %v367
        %v454 = vpop.f32.mrb[0].mxu0
        %v455 = vadd.f32 %v371, %v454
        %v456 = vpop.f32.mrb[0].mxu0
        %v457 = vpop.f32.mrb[0].mxu0
        %v458 = vadd.f32 %v371, %v457
        %v459 = vpop.f32.mrb[0].mxu0
        %460 = vdwg.mxu0
        %461 = vst [vmem:[%s160] sm:$0xff] %v455
        %462 = vst [vmem:[%s160 + $0x8] sm:$0xff] %v458
        %s463 = smul.u32 2, %s14
        %p464 = scmp.lt.s32.totalorder %s463, 3
        %s465 = scalar_select %p464, %s463, 3
        %s466 = smul.addr %s465, 8
        %s467 = scalar_lea.vmem %s2, %s466
        // Predicated region
        $region33: #{qnetwork_forward.1} parent=27 // pred_check
          %p468 = pneg %p79
        $region34: #{qnetwork_forward.1} parent=27 // pred_check_branch
          %470 = sbr.rel (%p468) target = $region36
        $region35: #{qnetwork_forward.1} parent=27 // pred_region
          %s471 = smul.u32 2, %s14
        $region36: #{qnetwork_forward.1} parent=27 // pred_fallthru
          _
      $region28: #{qnetwork_forward.1} parent=5 // pred_fallthru
        _
      %p472 = scmp.le.s32.totalorder 2, %s9
      // Predicated region
      $region37: #{qnetwork_forward.1} parent=5 // pred_check
        %p473 = pneg %p472
      $region38: #{qnetwork_forward.1} parent=5 // pred_check_branch
        %475 = sbr.rel (%p473) target = $region40
      $region39: #{qnetwork_forward.1} parent=5 // pred_region
        %s476 = ssub.s32 %s9, 2
        // Predicated region
        $region41: #{qnetwork_forward.1} parent=39 // pred_check
          %p477 = pneg %p85
        $region42: #{qnetwork_forward.1} parent=39 // pred_check_branch
          %479 = sbr.rel (%p477) target = $region44
        $region43: #{qnetwork_forward.1} parent=39 // pred_region
          %s480 = smul.u32 2, %s15
          %p481 = scmp.lt.s32.totalorder %s480, 3
          %s482 = scalar_select %p481, %s480, 3
          %s483 = smul.addr %s482, 8
          %s484 = scalar_lea.vmem %s2, %s483
        $region44: #{qnetwork_forward.1} parent=39 // pred_fallthru
          _
      $region40: #{qnetwork_forward.1} parent=5 // pred_fallthru
        _
    $region6: #{qnetwork_forward.1} parent=1 // loop_footer
      %s13 = sadd.s32 1, %s9
    $region7: #{qnetwork_forward.1} parent=1 // loop_footer_branch
      %8 = sbr.rel target = $region3
    $region8: #{qnetwork_forward.1} parent=1 // loop_exit
      _
    %485 = vsyncpa [#allocation3], 1
    %s486 = scalar_lea.sflag [#allocation3], 1
    %487 = vsyncpa %s486, 1

</llo_original>
